<compile_context>
chip_gen: v7x
topology: tpu7x:2x2x1
jax: 0.10.0
libtpu: 0.0.40
codegen_flags: <defaults>
</compile_context>

<pallas_src>
import jax
import jax.numpy as jnp
from jax.experimental import pallas as pl
from jax.experimental.pallas import tpu as pltpu


def _square_expression_kernel(x_ref, o_ref):
    # elementwise expression_fn: square(x) = x * x  (VPU)
    x = x_ref[...]
    o_ref[...] = x * x


_TARGET_BLOCK_BYTES = 2 << 20          # ~2 MiB per block
_LANE_CANDIDATES = (1024, 512, 256, 128)
_VMEM_LIMIT_BYTES = 32 * 1024 * 1024   # safe on v5e/v6e/v7x


def _sublane_multiple(dtype) -> int:
    # sub-32-bit dtypes pack along sublanes: 8 rows f32, 16 bf16, 32 int8/fp8
    return {4: 8, 2: 16, 1: 32}.get(jnp.dtype(dtype).itemsize, 8)


def _round_up(a: int, b: int) -> int:
    return (a + b - 1) // b * b


def _tiled_rows(rows: int, cols: int, dtype) -> int:
    """Sublane-aligned row tile <= rows (caller guarantees rows >= sublane)."""
    itemsize = jnp.dtype(dtype).itemsize
    sublane = _sublane_multiple(dtype)
    target = (_TARGET_BLOCK_BYTES // max(1, cols * itemsize)) // sublane * sublane
    tile_rows = min(max(sublane, target), rows // sublane * sublane)
    if rows >= 2 * sublane:
        # Keep >= 2 grid steps so v7x's two TensorCores both get work
        # (costs nothing on single-TC v5e/v6e).
        tile_rows = min(tile_rows, _round_up(pl.cdiv(rows, 2), sublane))
    return max(sublane, tile_rows)


def _pallas_square_2d(x2d: jax.Array) -> jax.Array:
    rows, cols = x2d.shape
    sublane = _sublane_multiple(x2d.dtype)
    if rows < sublane:
        tile_rows = rows  # whole-extent block: always a legal block shape
    else:
        tile_rows = _tiled_rows(rows, cols, x2d.dtype)
    grid_rows = pl.cdiv(rows, tile_rows)
    return pl.pallas_call(
        _square_expression_kernel,
        out_shape=jax.ShapeDtypeStruct((rows, cols), x2d.dtype),
        grid_spec=pl.GridSpec(
            grid=(grid_rows,),
            in_specs=[pl.BlockSpec((tile_rows, cols), lambda i: (i, 0))],
            out_specs=pl.BlockSpec((tile_rows, cols), lambda i: (i, 0)),
        ),
        compiler_params=pltpu.CompilerParams(
            dimension_semantics=("parallel",),
            vmem_limit_bytes=_VMEM_LIMIT_BYTES,
        ),
    )(x2d)


@jax.jit
def expression_forward(x: jax.Array) -> jax.Array:
    """Pallas equivalent of Expression(square).forward(x) for any-shape input.

    Note: squaring stays in the input dtype (matches torch semantics; narrow
    integer dtypes will wrap just like `x * x` does in PyTorch).
    """
    orig_shape = x.shape
    n_elems = x.size

    # Degenerate inputs: nothing for a kernel to do.
    if n_elems == 0 or x.ndim == 0:
        return x * x

    itemsize = jnp.dtype(x.dtype).itemsize
    sublane = _sublane_multiple(x.dtype)

    # Path 1: flat size divides a lane-dense width -> contiguous reshape
    # (bitcast, no HBM copy), unmasked lane-dense stores.
    lane = next((l for l in _LANE_CANDIDATES if n_elems % l == 0), None)
    if lane is not None:
        rows = n_elems // lane
        out2d = _pallas_square_2d(x.reshape(rows, lane))
        return out2d.reshape(orig_shape)

    # Path 2: keep the natural trailing dim as a full-width lane axis; Pallas
    # masks the ragged edge row-block. Still zero pad / slice copies.
    cols = orig_shape[-1]
    if cols * itemsize * sublane <= 2 * _TARGET_BLOCK_BYTES:
        rows = n_elems // cols
        out2d = _pallas_square_2d(x.reshape(rows, cols))
        return out2d.reshape(orig_shape)

    # Path 3 (pathological: huge, 128-indivisible trailing dim): minimal pad to
    # the next multiple of 512 (< 512 extra elements), slice the tail off after.
    lane = 512
    rows = pl.cdiv(n_elems, lane)
    padded = rows * lane
    x_flat = jnp.pad(x.reshape(-1), (0, padded - n_elems))
    out2d = _pallas_square_2d(x_flat.reshape(rows, lane))
    return out2d.reshape(-1)[:n_elems].reshape(orig_shape)


class Expression:
    """JAX/Pallas mirror of the PyTorch Expression module."""

    def __init__(self, expression_fn):
        self.expression_fn = expression_fn

    def __call__(self, *x):
        return self.expression_fn(*x)

    def __repr__(self):
        if hasattr(self.expression_fn, "func") and hasattr(self.expression_fn, "keywords"):
            name = "{:s} {:s}".format(
                self.expression_fn.func.__name__, str(self.expression_fn.keywords)
            )
        elif hasattr(self.expression_fn, "__name__"):
            name = self.expression_fn.__name__
        else:
            name = repr(self.expression_fn)
        return self.__class__.__name__ + "(expression=%s) " % name


if __name__ == "__main__":
    key = jax.random.PRNGKey(0)
    # Small NCHW input consistent with a conv-feature-map style operand.
    x = jax.random.normal(key, (2, 4, 16, 16), dtype=jnp.float32)

    module = Expression(expression_forward)  # expression_fn = Pallas square kernel
    out = jax.block_until_ready(module(x))
    assert out.shape == x.shape and out.dtype == x.dtype
    assert jnp.allclose(out, x * x, atol=1e-6, rtol=1e-6)

    # bf16 input exercises the 16-row sublane packing path.
    xb = x.astype(jnp.bfloat16)
    out_b = jax.block_until_ready(expression_forward(xb))
    assert out_b.dtype == jnp.bfloat16
    assert jnp.allclose(out_b.astype(jnp.float32), (xb * xb).astype(jnp.float32))

    # Non-128-divisible ragged shape -> full-width trailing-dim path (no pad).
    y = jax.random.normal(jax.random.PRNGKey(1), (3, 5, 7), dtype=jnp.float32)
    out_y = jax.block_until_ready(expression_forward(y))
    assert out_y.shape == y.shape
    assert jnp.allclose(out_y, y * y, atol=1e-6, rtol=1e-6)

    # Larger lane-aligned shape -> multi-step "parallel" grid (bitcast path).
    z = jax.random.normal(jax.random.PRNGKey(2), (8, 125, 1024), dtype=jnp.float32)
    out_z = jax.block_until_ready(expression_forward(z))
    assert jnp.allclose(out_z, z * z, atol=1e-6, rtol=1e-6)

    print("KERNEL_OK")
</pallas_src>

<mosaic_0001>
module attributes {stable_mosaic.version = 11 : i64} {
  func.func @_square_expression_kernel(%arg0: i32, %arg1: memref<2x1024xf32, #tpu.memory_space<vmem>>, %arg2: memref<2x1024xf32, #tpu.memory_space<vmem>>) attributes {dimension_semantics = [#tpu.dimension_semantics<parallel>], iteration_bounds = array<i64: 1>, scalar_prefetch = 0 : i64, scratch_operands = 0 : i64, tpu.core_type = #tpu.core_type<tc>, window_params = [{transform_indices = @transform_0, window_bounds = array<i64: 2, 1024>}, {transform_indices = @transform_1, window_bounds = array<i64: 2, 1024>}]} {
    %c0 = arith.constant 0 : index
    %c0_0 = arith.constant 0 : index
    %0 = vector.load %arg1[%c0, %c0_0] : memref<2x1024xf32, #tpu.memory_space<vmem>>, vector<2x1024xf32>
    %1 = arith.mulf %0, %0 : vector<2x1024xf32>
    %c0_1 = arith.constant 0 : index
    %c0_2 = arith.constant 0 : index
    %2 = vector.load %arg2[%c0_1, %c0_2] : memref<2x1024xf32, #tpu.memory_space<vmem>>, vector<2x1024xf32>
    tpu.vector_store %arg2[%c0_1, %c0_2], %1 {strides = array<i32>} : memref<2x1024xf32, #tpu.memory_space<vmem>>, vector<2x1024xf32>,
    return
  }
  func.func @transform_0(%arg0: i32) -> (i32, i32) {
    %c0_i32 = arith.constant 0 : i32
    %c0_i32_0 = arith.constant 0 : i32
    return %arg0, %c0_i32 : i32, i32
  }
  func.func @transform_1(%arg0: i32) -> (i32, i32) {
    %c0_i32 = arith.constant 0 : i32
    %c0_i32_0 = arith.constant 0 : i32
    return %arg0, %c0_i32 : i32, i32
  }
}

</mosaic_0001>

<llo_original>
// kernel: expression_forward.1
$region0: #{expression_forward.1}
  #allocation0 [shape = 'u32[]', space=smem, size = 0x4, offset = 0x4, fixed_abs, tag = 'smem constant byte address 0x4 - core index']
  #allocation1 [shape = 'u32[144,128]{1,0:T(1,128)}', space=vmem, size = 0x12000, scoped, tag = 'internal scratch']
  %s0 = inlined_call_operand.vmem [shape: f32[2,1024], index: 0, kind: input, shape index: {}]
  %s1 = inlined_call_operand.vmem [shape: f32[2,1024], index: 1, kind: output, shape index: {}]
  %s2 = sld [smem:[#allocation0]]
  $region14: #{expression_forward.1} parent=0
    _
  %s4 = ssub.s32 1, %s2
  %s5 = scalar_select 0, %s4, %s2
  // Predicated region
  $region2: #{expression_forward.1} parent=0 // pred_check
    _
  $region3: #{expression_forward.1} parent=0 // pred_check_branch
    %7 = sbr.rel (0) target = $region5
  $region4: #{expression_forward.1} parent=0 // pred_region
    _
  $region5: #{expression_forward.1} parent=0 // pred_fallthru
    _
  %v8 = vld [vmem:[%s0] sm:$0xff]
  %v9 = vld [vmem:[%s0 + $0x8] sm:$0xff]
  %v10 = vmul.f32 %v8, %v8
  %v11 = vmul.f32 %v9, %v9
  %12 = vst [vmem:[%s1] sm:$0xff] %v10
  %13 = vst [vmem:[%s1 + $0x8] sm:$0xff] %v11
  // Predicated region
  $region6: #{expression_forward.1} parent=0 // pred_check
    _
  $region7: #{expression_forward.1} parent=0 // pred_check_branch
    %15 = sbr.rel (0) target = $region9
  $region8: #{expression_forward.1} parent=0 // pred_region
    _
  $region9: #{expression_forward.1} parent=0 // pred_fallthru
    _
  // Predicated region
  $region10: #{expression_forward.1} parent=0 // pred_check
    _
  $region11: #{expression_forward.1} parent=0 // pred_check_branch
    %17 = sbr.rel (0) target = $region13
  $region12: #{expression_forward.1} parent=0 // pred_region
    _
  $region13: #{expression_forward.1} parent=0 // pred_fallthru
    _

</llo_original>
